<compile_context>
chip_gen: v7x
topology: tpu7x:2x2x1
jax: 0.10.0
libtpu: 0.0.40
codegen_flags: <defaults>
</compile_context>

<pallas_src>
import functools

import jax
import jax.numpy as jnp
from jax.experimental import pallas as pl
from jax.experimental.pallas import tpu as pltpu

_LANE = 128
_F_IN = 26   # model feature width


def _round_up(n, m):
    return ((n + m - 1) // m) * m


def _cdiv(a, b):
    return (a + b - 1) // b


def _clip01(v):
    # Hardsigmoid with the affine part (v/6 + 0.5) already folded into w/b.
    return jnp.minimum(jnp.maximum(v, 0.0), 1.0)


def _mlp_kernel_fm(x_ref,
                   w1_ref, b1_ref,   # Linear(26 -> 64)  (stack 1)  [folded]
                   w2_ref, b2_ref,   # Linear(64 -> 26)  (stack 1)  [folded]
                   w3_ref, b3_ref,   # Linear(26 -> 64)  (stack 2)  [folded]
                   w4_ref, b4_ref,   # Linear(64 -> 64)  (stack 2)  [folded]
                   w5_ref, b5_ref,   # Linear(64 -> 26)  (output)   [unfolded]
                   out_ref):
    """Feature-major kernel: activations are (features, TILE_B), batch on lanes."""
    cdt = w1_ref.dtype                       # matmul dtype (bf16 or f32)

    def dot_bias(w_ref, a, b_ref):
        # (out, in) @ (in, TILE_B) on the MXU, f32 accumulation; f32 bias add.
        return (jnp.dot(w_ref[...], a, preferred_element_type=jnp.float32)
                + b_ref[...])

    x = x_ref[...]                                           # (26, T) f32

    # linear_stack  (cast to matmul dtype once per activation)
    h = _clip01(dot_bias(w1_ref, x.astype(cdt), b1_ref))     # (64, T) f32
    y = _clip01(dot_bias(w2_ref, h.astype(cdt), b2_ref))     # (26, T) f32

    # residual add (f32)
    x2 = y + x                                               # (26, T)

    # linear_stack_2
    h2 = _clip01(dot_bias(w3_ref, x2.astype(cdt), b3_ref))   # (64, T)
    y2 = _clip01(dot_bias(w4_ref, h2.astype(cdt), b4_ref))   # (64, T)

    # output_layer (no activation)
    out_ref[...] = dot_bias(w5_ref, y2.astype(cdt), b5_ref).astype(out_ref.dtype)


def prepare_kernel_params(params, dots_dtype=jnp.bfloat16):
    """One-time transform to the kernel's feature-major layout:
      * weights transposed to (out, in), biases to (out, 1);
      * hardsigmoid affine folded into layers 1-4 (w/6, b/6 + 0.5) so the
        in-kernel activation is clip(v, 0, 1); output layer (w5/b5) unfolded;
      * weights cast to the matmul dtype (bf16 = native MXU dtype on v6e/v7x,
        halves weight DMA); biases stay f32 (VPU path, safe on v5e).
    Note: folding before the bf16 cast rounds slightly differently from
    casting first; well within the stated tolerances."""
    p = {}
    for i in (1, 2, 3, 4):
        p[f"w{i}"] = (params[f"w{i}"].T * (1.0 / 6.0)).astype(dots_dtype)
        p[f"b{i}"] = (params[f"b{i}"].T * (1.0 / 6.0) + 0.5).astype(jnp.float32)
    p["w5"] = params["w5"].T.astype(dots_dtype)
    p["b5"] = params["b5"].T.astype(jnp.float32)
    return p


def _choose_tiling(B, target_tile):
    """Return (tile_b, num_blocks, B_pad).

    tile_b is either B itself (single full-extent block, any alignment, no
    padding) or a multiple of 128 (lane-dense blocks).  Mid/large batches get
    at least two blocks so both v7x TensorCores receive work; any padding is
    a bounded remainder on the last block only."""
    if B <= 2 * _LANE:
        return B, 1, B                                  # tiny batch: one block
    target_tile = max(_LANE, (target_tile // _LANE) * _LANE)
    n_blocks = max(2, _cdiv(B, target_tile))            # >= 2 for v7x megacore
    tile_b = _round_up(_cdiv(B, n_blocks), _LANE)
    n_blocks = _cdiv(B, tile_b)
    return tile_b, n_blocks, n_blocks * tile_b


@functools.partial(jax.jit, static_argnames=("tile_b",))
def _forward_fm(x_fm, kp, tile_b):
    """x_fm: (26, B) float32 feature-major input -> (26, B) float32 output."""
    F, B = x_fm.shape
    tb, n_blocks, B_pad = _choose_tiling(B, tile_b)
    if B_pad != B:
        # Bounded pad of trailing columns only; zero columns flow through the
        # folded biases into garbage columns that are sliced off below (never
        # sum over padded output).
        x_fm = jnp.pad(x_fm, ((0, 0), (0, B_pad - B)))

    act_spec = pl.BlockSpec((F, tb), lambda i: (0, i))
    const_spec = lambda a: pl.BlockSpec(a.shape, lambda i, nd=a.ndim: (0,) * nd)

    weight_args = (kp["w1"], kp["b1"], kp["w2"], kp["b2"],
                   kp["w3"], kp["b3"], kp["w4"], kp["b4"],
                   kp["w5"], kp["b5"])

    flops = 2 * B_pad * (26 * 64 + 64 * 26 + 26 * 64 + 64 * 64 + 64 * 26)
    bytes_accessed = (x_fm.size * x_fm.dtype.itemsize
                      + B_pad * F * 4
                      + sum(int(a.size) * a.dtype.itemsize for a in weight_args))

    out = pl.pallas_call(
        _mlp_kernel_fm,
        out_shape=jax.ShapeDtypeStruct((F, B_pad), jnp.float32),
        grid=(n_blocks,),
        in_specs=[act_spec] + [const_spec(a) for a in weight_args],
        out_specs=act_spec,
        compiler_params=pltpu.CompilerParams(
            dimension_semantics=("parallel",),        # shards over 2 TCs on v7x
            vmem_limit_bytes=32 * 1024 * 1024),       # v5e default is only 16 MiB
        cost_estimate=pl.CostEstimate(flops=int(flops), transcendentals=0,
                                      bytes_accessed=int(bytes_accessed)),
    )(x_fm, *weight_args)

    return out[:, :B] if B_pad != B else out


def neural_network_forward_fm(x_fm, kernel_params, *, tile_b=8192):
    """Feature-major fast path: x_fm is (26, B); returns (26, B).
    Lane-dense end to end (no boundary transposes)."""
    assert x_fm.shape[0] == _F_IN, "feature dim must be 26"
    return _forward_fm(x_fm, kernel_params, tile_b)


@functools.partial(jax.jit, static_argnames=("tile_b",))
def _forward_rm(x, kp, tile_b):
    # Boundary transposes fuse with the pad/slice inside this jit, but they are
    # still extra HBM passes; prefer the feature-major entry point when the
    # caller can keep activations as (26, B).
    return _forward_fm(x.T, kp, tile_b).T


def neural_network_forward(x, kernel_params, *, tile_b=8192):
    """Drop-in (B, 26) -> (B, 26) interface matching the PyTorch module."""
    assert x.shape[1] == _F_IN, "feature dim must be 26"
    return _forward_rm(x, kernel_params, tile_b)


# ----------------------------------------------------------------------------
# Deterministic params + pure-JAX reference (unfolded, row-major, f32)
# ----------------------------------------------------------------------------
def init_params(key):
    """nn.Linear-style init; weights stored row-major as (in, out)."""
    def linear(k, fan_in, fan_out):
        kw, kb = jax.random.split(k)
        bound = 1.0 / (fan_in ** 0.5)
        w = jax.random.uniform(kw, (fan_in, fan_out), jnp.float32, -bound, bound)
        b = jax.random.uniform(kb, (1, fan_out), jnp.float32, -bound, bound)
        return w, b

    k1, k2, k3, k4, k5 = jax.random.split(key, 5)
    w1, b1 = linear(k1, 26, 64)
    w2, b2 = linear(k2, 64, 26)
    w3, b3 = linear(k3, 26, 64)
    w4, b4 = linear(k4, 64, 64)
    w5, b5 = linear(k5, 64, 26)
    return {"w1": w1, "b1": b1, "w2": w2, "b2": b2, "w3": w3, "b3": b3,
            "w4": w4, "b4": b4, "w5": w5, "b5": b5}


def _reference_forward(x, p):
    hs = lambda v: jnp.clip(v / 6.0 + 0.5, 0.0, 1.0)   # PyTorch nn.Hardsigmoid
    y = hs(hs(x @ p["w1"] + p["b1"]) @ p["w2"] + p["b2"])
    x2 = y + x
    y2 = hs(hs(x2 @ p["w3"] + p["b3"]) @ p["w4"] + p["b4"])
    return y2 @ p["w5"] + p["b5"]


if __name__ == "__main__":
    key = jax.random.PRNGKey(0)
    kx, kx2, kparams = jax.random.split(key, 3)

    params = init_params(kparams)

    # Matches the module's example input shape (26, 26): batch=26, features=26.
    x_small = jax.random.normal(kx, (26, 26), dtype=jnp.float32)
    ref_small = _reference_forward(x_small, params)

    # f32 matmul path: must match the reference tightly.
    kp_f32 = prepare_kernel_params(params, dots_dtype=jnp.float32)
    out_f32 = jax.block_until_ready(neural_network_forward(x_small, kp_f32))
    assert out_f32.shape == (26, 26)
    assert jnp.allclose(out_f32, ref_small, atol=1e-5, rtol=1e-5)

    # bf16 matmul path (preferred on v6e/v7x): looser tolerance.
    kp_bf16 = prepare_kernel_params(params, dots_dtype=jnp.bfloat16)
    out_bf16 = jax.block_until_ready(neural_network_forward(x_small, kp_bf16))
    assert out_bf16.shape == (26, 26)
    assert jnp.allclose(out_bf16, ref_small, atol=5e-2, rtol=5e-2)

    # Larger, non-aligned batch: exercises the multi-block grid (>= 2 blocks
    # for v7x), the bounded pad and the output slice.
    x_big = jax.random.normal(kx2, (1000, 26), dtype=jnp.float32)
    ref_big = _reference_forward(x_big, params)
    out_big = jax.block_until_ready(neural_network_forward(x_big, kp_f32))
    assert out_big.shape == (1000, 26)
    assert jnp.allclose(out_big, ref_big, atol=1e-5, rtol=1e-5)

    # Feature-major fast path (lane-dense, no boundary transposes).
    out_fm = jax.block_until_ready(neural_network_forward_fm(x_big.T, kp_f32))
    assert out_fm.shape == (26, 1000)
    assert jnp.allclose(out_fm, ref_big.T, atol=1e-5, rtol=1e-5)

    print("KERNEL_OK")
</pallas_src>

<mosaic_0001>
module attributes {stable_mosaic.version = 11 : i64} {
  func.func @_mlp_kernel_fm(%arg0: i32, %arg1: memref<26x26xf32, #tpu.memory_space<vmem>>, %arg2: memref<64x26xf32, #tpu.memory_space<vmem>>, %arg3: memref<64x1xf32, #tpu.memory_space<vmem>>, %arg4: memref<26x64xf32, #tpu.memory_space<vmem>>, %arg5: memref<26x1xf32, #tpu.memory_space<vmem>>, %arg6: memref<64x26xf32, #tpu.memory_space<vmem>>, %arg7: memref<64x1xf32, #tpu.memory_space<vmem>>, %arg8: memref<64x64xf32, #tpu.memory_space<vmem>>, %arg9: memref<64x1xf32, #tpu.memory_space<vmem>>, %arg10: memref<26x64xf32, #tpu.memory_space<vmem>>, %arg11: memref<26x1xf32, #tpu.memory_space<vmem>>, %arg12: memref<26x26xf32, #tpu.memory_space<vmem>>) attributes {dimension_semantics = [#tpu.dimension_semantics<parallel>], iteration_bounds = array<i64: 1>, scalar_prefetch = 0 : i64, scratch_operands = 0 : i64, tpu.core_type = #tpu.core_type<tc>, window_params = [{transform_indices = @transform_0, window_bounds = array<i64: 26, 26>}, {pipeline_mode = #tpu.pipeline_mode<synchronous>, transform_indices = @transform_1, window_bounds = array<i64: 64, 26>}, {pipeline_mode = #tpu.pipeline_mode<synchronous>, transform_indices = @transform_2, window_bounds = array<i64: 64, 1>}, {pipeline_mode = #tpu.pipeline_mode<synchronous>, transform_indices = @transform_3, window_bounds = array<i64: 26, 64>}, {pipeline_mode = #tpu.pipeline_mode<synchronous>, transform_indices = @transform_4, window_bounds = array<i64: 26, 1>}, {pipeline_mode = #tpu.pipeline_mode<synchronous>, transform_indices = @transform_5, window_bounds = array<i64: 64, 26>}, {pipeline_mode = #tpu.pipeline_mode<synchronous>, transform_indices = @transform_6, window_bounds = array<i64: 64, 1>}, {pipeline_mode = #tpu.pipeline_mode<synchronous>, transform_indices = @transform_7, window_bounds = array<i64: 64, 64>}, {pipeline_mode = #tpu.pipeline_mode<synchronous>, transform_indices = @transform_8, window_bounds = array<i64: 64, 1>}, {pipeline_mode = #tpu.pipeline_mode<synchronous>, transform_indices = @transform_9, window_bounds = array<i64: 26, 64>}, {pipeline_mode = #tpu.pipeline_mode<synchronous>, transform_indices = @transform_10, window_bounds = array<i64: 26, 1>}, {transform_indices = @transform_11, window_bounds = array<i64: 26, 26>}]} {
    %c0 = arith.constant 0 : index
    %c0_0 = arith.constant 0 : index
    %0 = vector.load %arg1[%c0, %c0_0] : memref<26x26xf32, #tpu.memory_space<vmem>>, vector<26x26xf32>
    %c0_1 = arith.constant 0 : index
    %c0_2 = arith.constant 0 : index
    %1 = vector.load %arg2[%c0_1, %c0_2] : memref<64x26xf32, #tpu.memory_space<vmem>>, vector<64x26xf32>
    %cst = arith.constant dense<0.000000e+00> : vector<64x26xf32>
    %2 = tpu.matmul %1, %0, %cst {dimension_numbers = #tpu.dot_dimension_numbers<[1], [0], [0], [1], [0, 0, 1, 1], [], []>} : vector<64x26xf32>, vector<26x26xf32>, vector<64x26xf32> -> vector<64x26xf32>
    %c0_3 = arith.constant 0 : index
    %c0_4 = arith.constant 0 : index
    %3 = vector.load %arg3[%c0_3, %c0_4] : memref<64x1xf32, #tpu.memory_space<vmem>>, vector<64x1xf32>
    %4 = vector.broadcast %3 : vector<64x1xf32> to vector<64x26xf32>
    %5 = arith.addf %2, %4 : vector<64x26xf32>
    %cst_5 = arith.constant 0.000000e+00 : f32
    %6 = vector.broadcast %cst_5 : f32 to vector<64x26xf32>
    %7 = arith.maximumf %5, %6 : vector<64x26xf32>
    %cst_6 = arith.constant 1.000000e+00 : f32
    %8 = vector.broadcast %cst_6 : f32 to vector<64x26xf32>
    %9 = arith.minimumf %7, %8 : vector<64x26xf32>
    %c0_7 = arith.constant 0 : index
    %c0_8 = arith.constant 0 : index
    %10 = vector.load %arg4[%c0_7, %c0_8] : memref<26x64xf32, #tpu.memory_space<vmem>>, vector<26x64xf32>
    %cst_9 = arith.constant dense<0.000000e+00> : vector<26x26xf32>
    %11 = tpu.matmul %10, %9, %cst_9 {dimension_numbers = #tpu.dot_dimension_numbers<[1], [0], [0], [1], [0, 0, 1, 1], [], []>} : vector<26x64xf32>, vector<64x26xf32>, vector<26x26xf32> -> vector<26x26xf32>
    %c0_10 = arith.constant 0 : index
    %c0_11 = arith.constant 0 : index
    %12 = vector.load %arg5[%c0_10, %c0_11] : memref<26x1xf32, #tpu.memory_space<vmem>>, vector<26x1xf32>
    %13 = vector.broadcast %12 : vector<26x1xf32> to vector<26x26xf32>
    %14 = arith.addf %11, %13 : vector<26x26xf32>
    %cst_12 = arith.constant 0.000000e+00 : f32
    %15 = vector.broadcast %cst_12 : f32 to vector<26x26xf32>
    %16 = arith.maximumf %14, %15 : vector<26x26xf32>
    %cst_13 = arith.constant 1.000000e+00 : f32
    %17 = vector.broadcast %cst_13 : f32 to vector<26x26xf32>
    %18 = arith.minimumf %16, %17 : vector<26x26xf32>
    %19 = arith.addf %18, %0 : vector<26x26xf32>
    %c0_14 = arith.constant 0 : index
    %c0_15 = arith.constant 0 : index
    %20 = vector.load %arg6[%c0_14, %c0_15] : memref<64x26xf32, #tpu.memory_space<vmem>>, vector<64x26xf32>
    %cst_16 = arith.constant dense<0.000000e+00> : vector<64x26xf32>
    %21 = tpu.matmul %20, %19, %cst_16 {dimension_numbers = #tpu.dot_dimension_numbers<[1], [0], [0], [1], [0, 0, 1, 1], [], []>} : vector<64x26xf32>, vector<26x26xf32>, vector<64x26xf32> -> vector<64x26xf32>
    %c0_17 = arith.constant 0 : index
    %c0_18 = arith.constant 0 : index
    %22 = vector.load %arg7[%c0_17, %c0_18] : memref<64x1xf32, #tpu.memory_space<vmem>>, vector<64x1xf32>
    %23 = vector.broadcast %22 : vector<64x1xf32> to vector<64x26xf32>
    %24 = arith.addf %21, %23 : vector<64x26xf32>
    %cst_19 = arith.constant 0.000000e+00 : f32
    %25 = vector.broadcast %cst_19 : f32 to vector<64x26xf32>
    %26 = arith.maximumf %24, %25 : vector<64x26xf32>
    %cst_20 = arith.constant 1.000000e+00 : f32
    %27 = vector.broadcast %cst_20 : f32 to vector<64x26xf32>
    %28 = arith.minimumf %26, %27 : vector<64x26xf32>
    %c0_21 = arith.constant 0 : index
    %c0_22 = arith.constant 0 : index
    %29 = vector.load %arg8[%c0_21, %c0_22] : memref<64x64xf32, #tpu.memory_space<vmem>>, vector<64x64xf32>
    %cst_23 = arith.constant dense<0.000000e+00> : vector<64x26xf32>
    %30 = tpu.matmul %29, %28, %cst_23 {dimension_numbers = #tpu.dot_dimension_numbers<[1], [0], [0], [1], [0, 0, 1, 1], [], []>} : vector<64x64xf32>, vector<64x26xf32>, vector<64x26xf32> -> vector<64x26xf32>
    %c0_24 = arith.constant 0 : index
    %c0_25 = arith.constant 0 : index
    %31 = vector.load %arg9[%c0_24, %c0_25] : memref<64x1xf32, #tpu.memory_space<vmem>>, vector<64x1xf32>
    %32 = vector.broadcast %31 : vector<64x1xf32> to vector<64x26xf32>
    %33 = arith.addf %30, %32 : vector<64x26xf32>
    %cst_26 = arith.constant 0.000000e+00 : f32
    %34 = vector.broadcast %cst_26 : f32 to vector<64x26xf32>
    %35 = arith.maximumf %33, %34 : vector<64x26xf32>
    %cst_27 = arith.constant 1.000000e+00 : f32
    %36 = vector.broadcast %cst_27 : f32 to vector<64x26xf32>
    %37 = arith.minimumf %35, %36 : vector<64x26xf32>
    %c0_28 = arith.constant 0 : index
    %c0_29 = arith.constant 0 : index
    %38 = vector.load %arg10[%c0_28, %c0_29] : memref<26x64xf32, #tpu.memory_space<vmem>>, vector<26x64xf32>
    %cst_30 = arith.constant dense<0.000000e+00> : vector<26x26xf32>
    %39 = tpu.matmul %38, %37, %cst_30 {dimension_numbers = #tpu.dot_dimension_numbers<[1], [0], [0], [1], [0, 0, 1, 1], [], []>} : vector<26x64xf32>, vector<64x26xf32>, vector<26x26xf32> -> vector<26x26xf32>
    %c0_31 = arith.constant 0 : index
    %c0_32 = arith.constant 0 : index
    %40 = vector.load %arg11[%c0_31, %c0_32] : memref<26x1xf32, #tpu.memory_space<vmem>>, vector<26x1xf32>
    %41 = vector.broadcast %40 : vector<26x1xf32> to vector<26x26xf32>
    %42 = arith.addf %39, %41 : vector<26x26xf32>
    %c0_33 = arith.constant 0 : index
    %c0_34 = arith.constant 0 : index
    %43 = vector.load %arg12[%c0_33, %c0_34] : memref<26x26xf32, #tpu.memory_space<vmem>>, vector<26x26xf32>
    tpu.vector_store %arg12[%c0_33, %c0_34], %42 {strides = array<i32>} : memref<26x26xf32, #tpu.memory_space<vmem>>, vector<26x26xf32>,
    return
  }
  func.func @transform_0(%arg0: i32) -> (i32, i32) {
    %c0_i32 = arith.constant 0 : i32
    %c0_i32_0 = arith.constant 0 : i32
    return %c0_i32, %arg0 : i32, i32
  }
  func.func @transform_1(%arg0: i32) -> (i32, i32) {
    %c0_i32 = arith.constant 0 : i32
    %c0_i32_0 = arith.constant 0 : i32
    %c0_i32_1 = arith.constant 0 : i32
    return %c0_i32, %c0_i32_0 : i32, i32
  }
  func.func @transform_2(%arg0: i32) -> (i32, i32) {
    %c0_i32 = arith.constant 0 : i32
    %c0_i32_0 = arith.constant 0 : i32
    %c0_i32_1 = arith.constant 0 : i32
    return %c0_i32, %c0_i32_0 : i32, i32
  }
  func.func @transform_3(%arg0: i32) -> (i32, i32) {
    %c0_i32 = arith.constant 0 : i32
    %c0_i32_0 = arith.constant 0 : i32
    %c0_i32_1 = arith.constant 0 : i32
    return %c0_i32, %c0_i32_0 : i32, i32
  }
  func.func @transform_4(%arg0: i32) -> (i32, i32) {
    %c0_i32 = arith.constant 0 : i32
    %c0_i32_0 = arith.constant 0 : i32
    %c0_i32_1 = arith.constant 0 : i32
    return %c0_i32, %c0_i32_0 : i32, i32
  }
  func.func @transform_5(%arg0: i32) -> (i32, i32) {
    %c0_i32 = arith.constant 0 : i32
    %c0_i32_0 = arith.constant 0 : i32
    %c0_i32_1 = arith.constant 0 : i32
    return %c0_i32, %c0_i32_0 : i32, i32
  }
  func.func @transform_6(%arg0: i32) -> (i32, i32) {
    %c0_i32 = arith.constant 0 : i32
    %c0_i32_0 = arith.constant 0 : i32
    %c0_i32_1 = arith.constant 0 : i32
    return %c0_i32, %c0_i32_0 : i32, i32
  }
  func.func @transform_7(%arg0: i32) -> (i32, i32) {
    %c0_i32 = arith.constant 0 : i32
    %c0_i32_0 = arith.constant 0 : i32
    %c0_i32_1 = arith.constant 0 : i32
    return %c0_i32, %c0_i32_0 : i32, i32
  }
  func.func @transform_8(%arg0: i32) -> (i32, i32) {
    %c0_i32 = arith.constant 0 : i32
    %c0_i32_0 = arith.constant 0 : i32
    %c0_i32_1 = arith.constant 0 : i32
    return %c0_i32, %c0_i32_0 : i32, i32
  }
  func.func @transform_9(%arg0: i32) -> (i32, i32) {
    %c0_i32 = arith.constant 0 : i32
    %c0_i32_0 = arith.constant 0 : i32
    %c0_i32_1 = arith.constant 0 : i32
    return %c0_i32, %c0_i32_0 : i32, i32
  }
  func.func @transform_10(%arg0: i32) -> (i32, i32) {
    %c0_i32 = arith.constant 0 : i32
    %c0_i32_0 = arith.constant 0 : i32
    %c0_i32_1 = arith.constant 0 : i32
    return %c0_i32, %c0_i32_0 : i32, i32
  }
  func.func @transform_11(%arg0: i32) -> (i32, i32) {
    %c0_i32 = arith.constant 0 : i32
    %c0_i32_0 = arith.constant 0 : i32
    return %c0_i32, %arg0 : i32, i32
  }
}

</mosaic_0001>

<llo_original>
// kernel: _forward_fm.1
$region0: #{_forward_fm.1}
  #allocation0 [shape = 'u32[]', space=smem, size = 0x4, offset = 0x4, fixed_abs, tag = 'smem constant byte address 0x4 - core index']
  #allocation1 [shape = 'u32[144,128]{1,0:T(1,128)}', space=vmem, size = 0x12000, scoped, tag = 'internal scratch']
  %s0 = inlined_call_operand.vmem [shape: f32[26,26], index: 0, kind: input, shape index: {}]
  %s1 = inlined_call_operand.vmem [shape: f32[64,26], index: 1, kind: input, shape index: {}]
  %s2 = inlined_call_operand.vmem [shape: f32[64,1], index: 2, kind: input, shape index: {}]
  %s3 = inlined_call_operand.vmem [shape: f32[26,64], index: 3, kind: input, shape index: {}]
  %s4 = inlined_call_operand.vmem [shape: f32[26,1], index: 4, kind: input, shape index: {}]
  %s5 = inlined_call_operand.vmem [shape: f32[64,26], index: 5, kind: input, shape index: {}]
  %s6 = inlined_call_operand.vmem [shape: f32[64,1], index: 6, kind: input, shape index: {}]
  %s7 = inlined_call_operand.vmem [shape: f32[64,64], index: 7, kind: input, shape index: {}]
  %s8 = inlined_call_operand.vmem [shape: f32[64,1], index: 8, kind: input, shape index: {}]
  %s9 = inlined_call_operand.vmem [shape: f32[26,64], index: 9, kind: input, shape index: {}]
  %s10 = inlined_call_operand.vmem [shape: f32[26,1], index: 10, kind: input, shape index: {}]
  %s11 = inlined_call_operand.hbm [shape: f32[26,26], index: 11, kind: output, shape index: {}]
  %s12 = sld [smem:[#allocation0]]
  $region54: #{_forward_fm.1} parent=0
    _
  %s14 = ssub.s32 1, %s12
  %s15 = scalar_select 0, %s14, %s12
  $region1: #{_forward_fm.1} parent=0
    #allocation2 [shape = 'u8[16384]{0}', space=vmem, size = 0x4000, scoped, tag = 'output window, operand 0, single buffered']
    #allocation3 [shape = 's32[1]{0}', space=sflag, size = 0x4, scoped, tag = 'scoped memory for _forward_fm.1']
    %16 = vsyncpa [#allocation3], 0
    // Predicated region
    $region2: #{_forward_fm.1} parent=1 // pred_check
      _
    $region3: #{_forward_fm.1} parent=1 // pred_check_branch
      %18 = sbr.rel (0) target = $region5
    $region4: #{_forward_fm.1} parent=1 // pred_region
      _
    $region5: #{_forward_fm.1} parent=1 // pred_fallthru
      _
    // Predicated region
    $region6: #{_forward_fm.1} parent=1 // pred_check
      _
    $region7: #{_forward_fm.1} parent=1 // pred_check_branch
      %20 = sbr.rel (0) target = $region9
    $region8: #{_forward_fm.1} parent=1 // pred_region
      _
    $region9: #{_forward_fm.1} parent=1 // pred_fallthru
      _
    // Predicated region
    $region10: #{_forward_fm.1} parent=1 // pred_check
      _
    $region11: #{_forward_fm.1} parent=1 // pred_check_branch
      %22 = sbr.rel (0) target = $region13
    $region12: #{_forward_fm.1} parent=1 // pred_region
      _
    $region13: #{_forward_fm.1} parent=1 // pred_fallthru
      _
    // Predicated region
    $region14: #{_forward_fm.1} parent=1 // pred_check
      _
    $region15: #{_forward_fm.1} parent=1 // pred_check_branch
      %24 = sbr.rel (0) target = $region17
    $region16: #{_forward_fm.1} parent=1 // pred_region
      _
    $region17: #{_forward_fm.1} parent=1 // pred_fallthru
      _
    // Predicated region
    $region18: #{_forward_fm.1} parent=1 // pred_check
      _
    $region19: #{_forward_fm.1} parent=1 // pred_check_branch
      %26 = sbr.rel (0) target = $region21
    $region20: #{_forward_fm.1} parent=1 // pred_region
      _
    $region21: #{_forward_fm.1} parent=1 // pred_fallthru
      _
    // Predicated region
    $region22: #{_forward_fm.1} parent=1 // pred_check
      _
    $region23: #{_forward_fm.1} parent=1 // pred_check_branch
      %28 = sbr.rel (0) target = $region25
    $region24: #{_forward_fm.1} parent=1 // pred_region
      _
    $region25: #{_forward_fm.1} parent=1 // pred_fallthru
      _
    // Predicated region
    $region26: #{_forward_fm.1} parent=1 // pred_check
      _
    $region27: #{_forward_fm.1} parent=1 // pred_check_branch
      %30 = sbr.rel (0) target = $region29
    $region28: #{_forward_fm.1} parent=1 // pred_region
      _
    $region29: #{_forward_fm.1} parent=1 // pred_fallthru
      _
    // Predicated region
    $region30: #{_forward_fm.1} parent=1 // pred_check
      _
    $region31: #{_forward_fm.1} parent=1 // pred_check_branch
      %32 = sbr.rel (0) target = $region33
    $region32: #{_forward_fm.1} parent=1 // pred_region
      _
    $region33: #{_forward_fm.1} parent=1 // pred_fallthru
      _
    // Predicated region
    $region34: #{_forward_fm.1} parent=1 // pred_check
      _
    $region35: #{_forward_fm.1} parent=1 // pred_check_branch
      %34 = sbr.rel (0) target = $region37
    $region36: #{_forward_fm.1} parent=1 // pred_region
      _
    $region37: #{_forward_fm.1} parent=1 // pred_fallthru
      _
    // Predicated region
    $region38: #{_forward_fm.1} parent=1 // pred_check
      _
    $region39: #{_forward_fm.1} parent=1 // pred_check_branch
      %36 = sbr.rel (0) target = $region41
    $region40: #{_forward_fm.1} parent=1 // pred_region
      _
    $region41: #{_forward_fm.1} parent=1 // pred_fallthru
      _
    // Predicated region
    $region42: #{_forward_fm.1} parent=1 // pred_check
      _
    $region43: #{_forward_fm.1} parent=1 // pred_check_branch
      %38 = sbr.rel (0) target = $region45
    $region44: #{_forward_fm.1} parent=1 // pred_region
      _
    $region45: #{_forward_fm.1} parent=1 // pred_fallthru
      _
    %v39 = vld [vmem:[%s0] sm:$0xff]
    %v40 = vld [vmem:[%s0 + $0x8] sm:$0xff]
    %v41 = vld [vmem:[%s0 + $0x10] sm:$0xff]
    %v42 = vld [vmem:[%s0 + $0x18] sm:$0x3]
    %v43 = vld [vmem:[%s1] sm:$0xff]
    %v44 = vld [vmem:[%s1 + $0x8] sm:$0xff]
    %v45 = vld [vmem:[%s1 + $0x10] sm:$0xff]
    %v46 = vld [vmem:[%s1 + $0x18] sm:$0xff]
    %v47 = vld [vmem:[%s1 + $0x20] sm:$0xff]
    %v48 = vld [vmem:[%s1 + $0x28] sm:$0xff]
    %v49 = vld [vmem:[%s1 + $0x30] sm:$0xff]
    %v50 = vld [vmem:[%s1 + $0x38] sm:$0xff]
    %v51 = vld [vmem:[%s2] sm:$0xff]
    %v52 = vld [vmem:[%s2 + $0x8] sm:$0xff]
    %v53 = vld [vmem:[%s2 + $0x10] sm:$0xff]
    %v54 = vld [vmem:[%s2 + $0x18] sm:$0xff]
    %v55 = vld [vmem:[%s2 + $0x20] sm:$0xff]
    %v56 = vld [vmem:[%s2 + $0x28] sm:$0xff]
    %v57 = vld [vmem:[%s2 + $0x30] sm:$0xff]
    %v58 = vld [vmem:[%s2 + $0x38] sm:$0xff]
    %60 = vset.pattern.permute.xlu0 0
    %61 = vperm.xlu0 %60, %v51
    %v62 = vpop.permute.xlu0 %61
    %65 = vset.pattern.permute.xlu0 0
    %66 = vperm.xlu0 %65, %v52
    %v67 = vpop.permute.xlu0 %66
    %70 = vset.pattern.permute.xlu0 0
    %71 = vperm.xlu0 %70, %v53
    %v72 = vpop.permute.xlu0 %71
    %75 = vset.pattern.permute.xlu0 0
    %76 = vperm.xlu0 %75, %v54
    %v77 = vpop.permute.xlu0 %76
    %80 = vset.pattern.permute.xlu0 0
    %81 = vperm.xlu0 %80, %v55
    %v82 = vpop.permute.xlu0 %81
    %85 = vset.pattern.permute.xlu0 0
    %86 = vperm.xlu0 %85, %v56
    %v87 = vpop.permute.xlu0 %86
    %90 = vset.pattern.permute.xlu0 0
    %91 = vperm.xlu0 %90, %v57
    %v92 = vpop.permute.xlu0 %91
    %95 = vset.pattern.permute.xlu0 0
    %96 = vperm.xlu0 %95, %v58
    %v97 = vpop.permute.xlu0 %96
    %vm99 = vcmask 211968
    %v101 = vsel %vm99, %v43, 0
    %v104 = vsel %vm99, %v44, 0
    %v107 = vsel %vm99, %v45, 0
    %v110 = vsel %vm99, %v46, 0
    %v113 = vsel %vm99, %v47, 0
    %v116 = vsel %vm99, %v48, 0
    %v119 = vsel %vm99, %v49, 0
    %v122 = vsel %vm99, %v50, 0
    %vm124 = vcmask 1041408
    %v126 = vsel %vm124, %v42, 0
    %128 = vmatprep.subr.mxu0 0.0
    %129 = vmatpush1.msra.mxu0 %v39
    %130 = vmatprep.subr.mxu0 0.0
    %131 = vmatpush1.msra.mxu0 %v40
    %132 = vmatprep.subr.mxu0 0.0
    %133 = vmatpush1.msra.mxu0 %v41
    %134 = vmatprep.subr.mxu0 0.0
    %135 = vmatpush1.msra.mxu0 %v126
    %136 = vmatprep.subr.mxu0 0.0
    %137 = vmatpush1.msra.mxu0 0.0
    %138 = vmatprep.subr.mxu0 0.0
    %139 = vmatpush1.msra.mxu0 0.0
    %140 = vmatprep.subr.mxu0 0.0
    %141 = vmatpush1.msra.mxu0 0.0
    %142 = vmatprep.subr.mxu0 0.0
    %143 = vmatpush1.msra.mxu0 0.0
    %144 = vmatprep.subr.mxu0 0.0
    %145 = vmatpush1.msra.mxu0 0.0
    %146 = vmatprep.subr.mxu0 0.0
    %147 = vmatpush1.msra.mxu0 0.0
    %148 = vmatprep.subr.mxu0 0.0
    %149 = vmatpush1.msra.mxu0 0.0
    %150 = vmatprep.subr.mxu0 0.0
    %151 = vmatpush1.msra.mxu0 0.0
    %152 = vmatprep.subr.mxu0 0.0
    %153 = vmatpush1.msra.mxu0 0.0
    %154 = vmatprep.subr.mxu0 0.0
    %155 = vmatpush1.msra.mxu0 0.0
    %156 = vmatprep.subr.mxu0 0.0
    %157 = vmatpush1.msra.mxu0 0.0
    %158 = vmatprep.subr.mxu0 0.0
    %159 = vmatpush1.msra.mxu0 0.0
    %160 = vmatprep.subr.mxu0 0.0
    %161 = vmatpush1.msra.mxu0 0.0
    %162 = vmatprep.subr.mxu0 0.0
    %163 = vmatpush1.msra.mxu0 0.0
    %164 = vmatprep.subr.mxu0 0.0
    %165 = vmatpush1.msra.mxu0 0.0
    %166 = vmatprep.subr.mxu0 0.0
    %167 = vmatpush1.msra.mxu0 0.0
    %168 = vmatprep.subr.mxu0 0.0
    %169 = vmatpush1.msra.mxu0 0.0
    %170 = vmatprep.subr.mxu0 0.0
    %171 = vmatpush1.msra.mxu0 0.0
    %172 = vmatprep.subr.mxu0 0.0
    %173 = vmatpush1.msra.mxu0 0.0
    %174 = vmatprep.subr.mxu0 0.0
    %175 = vmatpush1.msra.mxu0 0.0
    %176 = vmatprep.subr.mxu0 0.0
    %177 = vmatpush1.msra.mxu0 0.0
    %178 = vmatprep.subr.mxu0 0.0
    %179 = vmatpush1.msra.mxu0 0.0
    %180 = vmatprep.subr.mxu0 0.0
    %181 = vmatpush1.msra.mxu0 0.0
    %182 = vmatprep.subr.mxu0 0.0
    %183 = vmatpush1.msra.mxu0 0.0
    %184 = vmatprep.subr.mxu0 0.0
    %185 = vmatpush1.msra.mxu0 0.0
    %186 = vmatprep.subr.mxu0 0.0
    %187 = vmatpush1.msra.mxu0 0.0
    %188 = vmatprep.subr.mxu0 0.0
    %189 = vmatpush1.msra.mxu0 0.0
    %190 = vmatprep.subr.mxu0 0.0
    %191 = vmatpush1.msra.mxu0 0.0
    %192 = vmatprep.mubr.f32.mxu0 0.0
    %193 = vmatmul.mubr.f32.gmra.mrb[0].mxu0 %v101
    %v194 = vpop.f32.mrb[0].mxu0
    %v195 = vadd.f32 %v62, %v194
    %v196 = vpop.f32.mrb[0].mxu0
    %197 = vmatprep.mubr.f32.mxu0 0.0
    %198 = vmatmul.mubr.f32.gmra.mrb[0].mxu0 %v104
    %v199 = vpop.f32.mrb[0].mxu0
    %v200 = vadd.f32 %v67, %v199
    %v201 = vpop.f32.mrb[0].mxu0
    %202 = vmatprep.mubr.f32.mxu0 0.0
    %203 = vmatmul.mubr.f32.gmra.mrb[0].mxu0 %v107
    %v204 = vpop.f32.mrb[0].mxu0
    %v205 = vadd.f32 %v72, %v204
    %v206 = vpop.f32.mrb[0].mxu0
    %207 = vmatprep.mubr.f32.mxu0 0.0
    %208 = vmatmul.mubr.f32.gmra.mrb[0].mxu0 %v110
    %v209 = vpop.f32.mrb[0].mxu0
    %v210 = vadd.f32 %v77, %v209
    %v211 = vpop.f32.mrb[0].mxu0
    %212 = vmatprep.mubr.f32.mxu0 0.0
    %213 = vmatmul.mubr.f32.gmra.mrb[0].mxu0 %v113
    %v214 = vpop.f32.mrb[0].mxu0
    %v215 = vadd.f32 %v82, %v214
    %v216 = vpop.f32.mrb[0].mxu0
    %217 = vmatprep.mubr.f32.mxu0 0.0
    %218 = vmatmul.mubr.f32.gmra.mrb[0].mxu0 %v116
    %v219 = vpop.f32.mrb[0].mxu0
    %v220 = vadd.f32 %v87, %v219
    %v221 = vpop.f32.mrb[0].mxu0
    %222 = vmatprep.mubr.f32.mxu0 0.0
    %223 = vmatmul.mubr.f32.gmra.mrb[0].mxu0 %v119
    %v224 = vpop.f32.mrb[0].mxu0
    %v225 = vadd.f32 %v92, %v224
    %v226 = vpop.f32.mrb[0].mxu0
    %227 = vmatprep.mubr.f32.mxu0 0.0
    %228 = vmatmul.mubr.f32.gmra.mrb[0].mxu0 %v122
    %v229 = vpop.f32.mrb[0].mxu0
    %v230 = vadd.f32 %v97, %v229
    %v231 = vpop.f32.mrb[0].mxu0
    %232 = vdwg.mxu0
    %v233 = vmax.f32 %v195, 0.0
    %v234 = vmax.f32 %v200, 0.0
    %v235 = vmax.f32 %v205, 0.0
    %v236 = vmax.f32 %v210, 0.0
    %v237 = vmax.f32 %v215, 0.0
    %v238 = vmax.f32 %v220, 0.0
    %v239 = vmax.f32 %v225, 0.0
    %v240 = vmax.f32 %v230, 0.0
    %v241 = vmin.f32 %v233, 1.0
    %v242 = vmin.f32 %v234, 1.0
    %v243 = vmin.f32 %v235, 1.0
    %v244 = vmin.f32 %v236, 1.0
    %v245 = vmin.f32 %v237, 1.0
    %v246 = vmin.f32 %v238, 1.0
    %v247 = vmin.f32 %v239, 1.0
    %v248 = vmin.f32 %v240, 1.0
    %v249 = vld [vmem:[%s3] sm:$0xff]
    %v250 = vld [vmem:[%s3 + $0x8] sm:$0xff]
    %v251 = vld [vmem:[%s3 + $0x10] sm:$0xff]
    %v252 = vld [vmem:[%s3 + $0x18] sm:$0x3]
    %v253 = vld [vmem:[%s4] sm:$0xff]
    %v254 = vld [vmem:[%s4 + $0x8] sm:$0xff]
    %v255 = vld [vmem:[%s4 + $0x10] sm:$0xff]
    %v256 = vld [vmem:[%s4 + $0x18] sm:$0x3]
    %258 = vset.pattern.permute.xlu0 0
    %259 = vperm.xlu0 %258, %v253
    %v260 = vpop.permute.xlu0 %259
    %263 = vset.pattern.permute.xlu0 0
    %264 = vperm.xlu0 %263, %v254
    %v265 = vpop.permute.xlu0 %264
    %268 = vset.pattern.permute.xlu0 0
    %269 = vperm.xlu0 %268, %v255
    %v270 = vpop.permute.xlu0 %269
    %273 = vset.pattern.permute.xlu0 0
    %274 = vperm.xlu0 %273, %v256
    %v275 = vpop.permute.xlu0 %274
    %vm277 = vcmask 523264
    %v279 = vsel %vm277, %v249, 0
    %v282 = vsel %vm277, %v250, 0
    %v285 = vsel %vm277, %v251, 0
    %v288 = vsel %vm277, %v252, 0
    %290 = vmatprep.subr.mxu0 0.0
    %291 = vmatpush1.msra.mxu0 %v241
    %292 = vmatprep.subr.mxu0 0.0
    %293 = vmatpush1.msra.mxu0 %v242
    %294 = vmatprep.subr.mxu0 0.0
    %295 = vmatpush1.msra.mxu0 %v243
    %296 = vmatprep.subr.mxu0 0.0
    %297 = vmatpush1.msra.mxu0 %v244
    %298 = vmatprep.subr.mxu0 0.0
    %299 = vmatpush1.msra.mxu0 %v245
    %300 = vmatprep.subr.mxu0 0.0
    %301 = vmatpush1.msra.mxu0 %v246
    %302 = vmatprep.subr.mxu0 0.0
    %303 = vmatpush1.msra.mxu0 %v247
    %304 = vmatprep.subr.mxu0 0.0
    %305 = vmatpush1.msra.mxu0 %v248
    %306 = vmatprep.subr.mxu0 0.0
    %307 = vmatpush1.msra.mxu0 0.0
    %308 = vmatprep.subr.mxu0 0.0
    %309 = vmatpush1.msra.mxu0 0.0
    %310 = vmatprep.subr.mxu0 0.0
    %311 = vmatpush1.msra.mxu0 0.0
    %312 = vmatprep.subr.mxu0 0.0
    %313 = vmatpush1.msra.mxu0 0.0
    %314 = vmatprep.subr.mxu0 0.0
    %315 = vmatpush1.msra.mxu0 0.0
    %316 = vmatprep.subr.mxu0 0.0
    %317 = vmatpush1.msra.mxu0 0.0
    %318 = vmatprep.subr.mxu0 0.0
    %319 = vmatpush1.msra.mxu0 0.0
    %320 = vmatprep.subr.mxu0 0.0
    %321 = vmatpush1.msra.mxu0 0.0
    %322 = vmatprep.subr.mxu0 0.0
    %323 = vmatpush1.msra.mxu0 0.0
    %324 = vmatprep.subr.mxu0 0.0
    %325 = vmatpush1.msra.mxu0 0.0
    %326 = vmatprep.subr.mxu0 0.0
    %327 = vmatpush1.msra.mxu0 0.0
    %328 = vmatprep.subr.mxu0 0.0
    %329 = vmatpush1.msra.mxu0 0.0
    %330 = vmatprep.subr.mxu0 0.0
    %331 = vmatpush1.msra.mxu0 0.0
    %332 = vmatprep.subr.mxu0 0.0
    %333 = vmatpush1.msra.mxu0 0.0
    %334 = vmatprep.subr.mxu0 0.0
    %335 = vmatpush1.msra.mxu0 0.0
    %336 = vmatprep.subr.mxu0 0.0
    %337 = vmatpush1.msra.mxu0 0.0
    %338 = vmatprep.subr.mxu0 0.0
    %339 = vmatpush1.msra.mxu0 0.0
    %340 = vmatprep.subr.mxu0 0.0
    %341 = vmatpush1.msra.mxu0 0.0
    %342 = vmatprep.subr.mxu0 0.0
    %343 = vmatpush1.msra.mxu0 0.0
    %344 = vmatprep.subr.mxu0 0.0
    %345 = vmatpush1.msra.mxu0 0.0
    %346 = vmatprep.subr.mxu0 0.0
    %347 = vmatpush1.msra.mxu0 0.0
    %348 = vmatprep.subr.mxu0 0.0
    %349 = vmatpush1.msra.mxu0 0.0
    %350 = vmatprep.subr.mxu0 0.0
    %351 = vmatpush1.msra.mxu0 0.0
    %352 = vmatprep.subr.mxu0 0.0
    %353 = vmatpush1.msra.mxu0 0.0
    %354 = vmatprep.mubr.f32.mxu0 0.0
    %355 = vmatmul.mubr.f32.gmra.mrb[0].mxu0 %v279
    %v356 = vpop.f32.mrb[0].mxu0
    %v357 = vadd.f32 %v260, %v356
    %v358 = vpop.f32.mrb[0].mxu0
    %359 = vmatprep.mubr.f32.mxu0 0.0
    %360 = vmatmul.mubr.f32.gmra.mrb[0].mxu0 %v282
    %v361 = vpop.f32.mrb[0].mxu0
    %v362 = vadd.f32 %v265, %v361
    %v363 = vpop.f32.mrb[0].mxu0
    %364 = vmatprep.mubr.f32.mxu0 0.0
    %365 = vmatmul.mubr.f32.gmra.mrb[0].mxu0 %v285
    %v366 = vpop.f32.mrb[0].mxu0
    %v367 = vadd.f32 %v270, %v366
    %v368 = vpop.f32.mrb[0].mxu0
    %369 = vmatprep.mubr.f32.mxu0 0.0
    %370 = vmatmul.mubr.f32.gmra.mrb[0].mxu0 %v288
    %v371 = vpop.f32.mrb[0].mxu0
    %v372 = vadd.f32 %v275, %v371
    %v373 = vpop.f32.mrb[0].mxu0
    %374 = vdwg.mxu0
    %v375 = vmax.f32 %v357, 0.0
    %v376 = vmax.f32 %v362, 0.0
    %v377 = vmax.f32 %v367, 0.0
    %v378 = vmax.f32 %v372, 0.0
    %v379 = vmin.f32 %v375, 1.0
    %v380 = vmin.f32 %v376, 1.0
    %v381 = vmin.f32 %v377, 1.0
    %v382 = vmin.f32 %v378, 1.0
    %v383 = vadd.f32 %v379, %v39
    %v384 = vadd.f32 %v380, %v40
    %v385 = vadd.f32 %v381, %v41
    %v386 = vadd.f32 %v382, %v42
    %v387 = vld [vmem:[%s5] sm:$0xff]
    %v388 = vld [vmem:[%s5 + $0x8] sm:$0xff]
    %v389 = vld [vmem:[%s5 + $0x10] sm:$0xff]
    %v390 = vld [vmem:[%s5 + $0x18] sm:$0xff]
    %v391 = vld [vmem:[%s5 + $0x20] sm:$0xff]
    %v392 = vld [vmem:[%s5 + $0x28] sm:$0xff]
    %v393 = vld [vmem:[%s5 + $0x30] sm:$0xff]
    %v394 = vld [vmem:[%s5 + $0x38] sm:$0xff]
    %v395 = vld [vmem:[%s6] sm:$0xff]
    %v396 = vld [vmem:[%s6 + $0x8] sm:$0xff]
    %v397 = vld [vmem:[%s6 + $0x10] sm:$0xff]
    %v398 = vld [vmem:[%s6 + $0x18] sm:$0xff]
    %v399 = vld [vmem:[%s6 + $0x20] sm:$0xff]
    %v400 = vld [vmem:[%s6 + $0x28] sm:$0xff]
    %v401 = vld [vmem:[%s6 + $0x30] sm:$0xff]
    %v402 = vld [vmem:[%s6 + $0x38] sm:$0xff]
    %404 = vset.pattern.permute.xlu0 0
    %405 = vperm.xlu0 %404, %v395
    %v406 = vpop.permute.xlu0 %405
    %409 = vset.pattern.permute.xlu0 0
    %410 = vperm.xlu0 %409, %v396
    %v411 = vpop.permute.xlu0 %410
    %414 = vset.pattern.permute.xlu0 0
    %415 = vperm.xlu0 %414, %v397
    %v416 = vpop.permute.xlu0 %415
    %419 = vset.pattern.permute.xlu0 0
    %420 = vperm.xlu0 %419, %v398
    %v421 = vpop.permute.xlu0 %420
    %424 = vset.pattern.permute.xlu0 0
    %425 = vperm.xlu0 %424, %v399
    %v426 = vpop.permute.xlu0 %425
    %429 = vset.pattern.permute.xlu0 0
    %430 = vperm.xlu0 %429, %v400
    %v431 = vpop.permute.xlu0 %430
    %434 = vset.pattern.permute.xlu0 0
    %435 = vperm.xlu0 %434, %v401
    %v436 = vpop.permute.xlu0 %435
    %439 = vset.pattern.permute.xlu0 0
    %440 = vperm.xlu0 %439, %v402
    %v441 = vpop.permute.xlu0 %440
    %v444 = vsel %vm99, %v387, 0
    %v447 = vsel %vm99, %v388, 0
    %v450 = vsel %vm99, %v389, 0
    %v453 = vsel %vm99, %v390, 0
    %v456 = vsel %vm99, %v391, 0
    %v459 = vsel %vm99, %v392, 0
    %v462 = vsel %vm99, %v393, 0
    %v465 = vsel %vm99, %v394, 0
    %v468 = vsel %vm124, %v386, 0
    %470 = vmatprep.subr.mxu0 0.0
    %471 = vmatpush1.msra.mxu0 %v383
    %472 = vmatprep.subr.mxu0 0.0
    %473 = vmatpush1.msra.mxu0 %v384
    %474 = vmatprep.subr.mxu0 0.0
    %475 = vmatpush1.msra.mxu0 %v385
    %476 = vmatprep.subr.mxu0 0.0
    %477 = vmatpush1.msra.mxu0 %v468
    %478 = vmatprep.subr.mxu0 0.0
    %479 = vmatpush1.msra.mxu0 0.0
    %480 = vmatprep.subr.mxu0 0.0
    %481 = vmatpush1.msra.mxu0 0.0
    %482 = vmatprep.subr.mxu0 0.0
    %483 = vmatpush1.msra.mxu0 0.0
    %484 = vmatprep.subr.mxu0 0.0
    %485 = vmatpush1.msra.mxu0 0.0
    %486 = vmatprep.subr.mxu0 0.0
    %487 = vmatpush1.msra.mxu0 0.0
    %488 = vmatprep.subr.mxu0 0.0
    %489 = vmatpush1.msra.mxu0 0.0
    %490 = vmatprep.subr.mxu0 0.0
    %491 = vmatpush1.msra.mxu0 0.0
    %492 = vmatprep.subr.mxu0 0.0
    %493 = vmatpush1.msra.mxu0 0.0
    %494 = vmatprep.subr.mxu0 0.0
    %495 = vmatpush1.msra.mxu0 0.0
    %496 = vmatprep.subr.mxu0 0.0
    %497 = vmatpush1.msra.mxu0 0.0
    %498 = vmatprep.subr.mxu0 0.0
    %499 = vmatpush1.msra.mxu0 0.0
    %500 = vmatprep.subr.mxu0 0.0
    %501 = vmatpush1.msra.mxu0 0.0
    %502 = vmatprep.subr.mxu0 0.0
    %503 = vmatpush1.msra.mxu0 0.0
    %504 = vmatprep.subr.mxu0 0.0
    %505 = vmatpush1.msra.mxu0 0.0
    %506 = vmatprep.subr.mxu0 0.0
    %507 = vmatpush1.msra.mxu0 0.0
    %508 = vmatprep.subr.mxu0 0.0
    %509 = vmatpush1.msra.mxu0 0.0
    %510 = vmatprep.subr.mxu0 0.0
    %511 = vmatpush1.msra.mxu0 0.0
    %512 = vmatprep.subr.mxu0 0.0
    %513 = vmatpush1.msra.mxu0 0.0
    %514 = vmatprep.subr.mxu0 0.0
    %515 = vmatpush1.msra.mxu0 0.0
    %516 = vmatprep.subr.mxu0 0.0
    %517 = vmatpush1.msra.mxu0 0.0
    %518 = vmatprep.subr.mxu0 0.0
    %519 = vmatpush1.msra.mxu0 0.0
    %520 = vmatprep.subr.mxu0 0.0
    %521 = vmatpush1.msra.mxu0 0.0
    %522 = vmatprep.subr.mxu0 0.0
    %523 = vmatpush1.msra.mxu0 0.0
    %524 = vmatprep.subr.mxu0 0.0
    %525 = vmatpush1.msra.mxu0 0.0
    %526 = vmatprep.subr.mxu0 0.0
    %527 = vmatpush1.msra.mxu0 0.0
    %528 = vmatprep.subr.mxu0 0.0
    %529 = vmatpush1.msra.mxu0 0.0
    %530 = vmatprep.subr.mxu0 0.0
    %531 = vmatpush1.msra.mxu0 0.0
    %532 = vmatprep.subr.mxu0 0.0
    %533 = vmatpush1.msra.mxu0 0.0
    %534 = vmatprep.mubr.f32.mxu0 0.0
    %535 = vmatmul.mubr.f32.gmra.mrb[0].mxu0 %v444
    %v536 = vpop.f32.mrb[0].mxu0
    %v537 = vadd.f32 %v406, %v536
    %v538 = vpop.f32.mrb[0].mxu0
    %539 = vmatprep.mubr.f32.mxu0 0.0
    %540 = vmatmul.mubr.f32.gmra.mrb[0].mxu0 %v447
    %v541 = vpop.f32.mrb[0].mxu0
    %v542 = vadd.f32 %v411, %v541
    %v543 = vpop.f32.mrb[0].mxu0
    %544 = vmatprep.mubr.f32.mxu0 0.0
    %545 = vmatmul.mubr.f32.gmra.mrb[0].mxu0 %v450
    %v546 = vpop.f32.mrb[0].mxu0
    %v547 = vadd.f32 %v416, %v546
    %v548 = vpop.f32.mrb[0].mxu0
    %549 = vmatprep.mubr.f32.mxu0 0.0
    %550 = vmatmul.mubr.f32.gmra.mrb[0].mxu0 %v453
    %v551 = vpop.f32.mrb[0].mxu0
    %v552 = vadd.f32 %v421, %v551
    %v553 = vpop.f32.mrb[0].mxu0
    %554 = vmatprep.mubr.f32.mxu0 0.0
    %555 = vmatmul.mubr.f32.gmra.mrb[0].mxu0 %v456
    %v556 = vpop.f32.mrb[0].mxu0
    %v557 = vadd.f32 %v426, %v556
    %v558 = vpop.f32.mrb[0].mxu0
    %559 = vmatprep.mubr.f32.mxu0 0.0
    %560 = vmatmul.mubr.f32.gmra.mrb[0].mxu0 %v459
    %v561 = vpop.f32.mrb[0].mxu0
    %v562 = vadd.f32 %v431, %v561
    %v563 = vpop.f32.mrb[0].mxu0
    %564 = vmatprep.mubr.f32.mxu0 0.0
    %565 = vmatmul.mubr.f32.gmra.mrb[0].mxu0 %v462
    %v566 = vpop.f32.mrb[0].mxu0
    %v567 = vadd.f32 %v436, %v566
    %v568 = vpop.f32.mrb[0].mxu0
    %569 = vmatprep.mubr.f32.mxu0 0.0
    %570 = vmatmul.mubr.f32.gmra.mrb[0].mxu0 %v465
    %v571 = vpop.f32.mrb[0].mxu0
    %v572 = vadd.f32 %v441, %v571
    %v573 = vpop.f32.mrb[0].mxu0
    %574 = vdwg.mxu0
    %v575 = vmax.f32 %v537, 0.0
    %v576 = vmax.f32 %v542, 0.0
    %v577 = vmax.f32 %v547, 0.0
    %v578 = vmax.f32 %v552, 0.0
    %v579 = vmax.f32 %v557, 0.0
    %v580 = vmax.f32 %v562, 0.0
    %v581 = vmax.f32 %v567, 0.0
    %v582 = vmax.f32 %v572, 0.0
    %v583 = vmin.f32 %v575, 1.0
    %v584 = vmin.f32 %v576, 1.0
    %v585 = vmin.f32 %v577, 1.0
    %v586 = vmin.f32 %v578, 1.0
    %v587 = vmin.f32 %v579, 1.0
    %v588 = vmin.f32 %v580, 1.0
    %v589 = vmin.f32 %v581, 1.0
    %v590 = vmin.f32 %v582, 1.0
    %v591 = vld [vmem:[%s7] sm:$0xff]
    %v592 = vld [vmem:[%s7 + $0x8] sm:$0xff]
    %v593 = vld [vmem:[%s7 + $0x10] sm:$0xff]
    %v594 = vld [vmem:[%s7 + $0x18] sm:$0xff]
    %v595 = vld [vmem:[%s7 + $0x20] sm:$0xff]
    %v596 = vld [vmem:[%s7 + $0x28] sm:$0xff]
    %v597 = vld [vmem:[%s7 + $0x30] sm:$0xff]
    %v598 = vld [vmem:[%s7 + $0x38] sm:$0xff]
    %v599 = vld [vmem:[%s8] sm:$0xff]
    %v600 = vld [vmem:[%s8 + $0x8] sm:$0xff]
    %v601 = vld [vmem:[%s8 + $0x10] sm:$0xff]
    %v602 = vld [vmem:[%s8 + $0x18] sm:$0xff]
    %v603 = vld [vmem:[%s8 + $0x20] sm:$0xff]
    %v604 = vld [vmem:[%s8 + $0x28] sm:$0xff]
    %v605 = vld [vmem:[%s8 + $0x30] sm:$0xff]
    %v606 = vld [vmem:[%s8 + $0x38] sm:$0xff]
    %608 = vset.pattern.permute.xlu0 0
    %609 = vperm.xlu0 %608, %v599
    %v610 = vpop.permute.xlu0 %609
    %613 = vset.pattern.permute.xlu0 0
    %614 = vperm.xlu0 %613, %v600
    %v615 = vpop.permute.xlu0 %614
    %618 = vset.pattern.permute.xlu0 0
    %619 = vperm.xlu0 %618, %v601
    %v620 = vpop.permute.xlu0 %619
    %623 = vset.pattern.permute.xlu0 0
    %624 = vperm.xlu0 %623, %v602
    %v625 = vpop.permute.xlu0 %624
    %628 = vset.pattern.permute.xlu0 0
    %629 = vperm.xlu0 %628, %v603
    %v630 = vpop.permute.xlu0 %629
    %633 = vset.pattern.permute.xlu0 0
    %634 = vperm.xlu0 %633, %v604
    %v635 = vpop.permute.xlu0 %634
    %638 = vset.pattern.permute.xlu0 0
    %639 = vperm.xlu0 %638, %v605
    %v640 = vpop.permute.xlu0 %639
    %643 = vset.pattern.permute.xlu0 0
    %644 = vperm.xlu0 %643, %v606
    %v645 = vpop.permute.xlu0 %644
    %v648 = vsel %vm277, %v591, 0
    %v651 = vsel %vm277, %v592, 0
    %v654 = vsel %vm277, %v593, 0
    %v657 = vsel %vm277, %v594, 0
    %v660 = vsel %vm277, %v595, 0
    %v663 = vsel %vm277, %v596, 0
    %v666 = vsel %vm277, %v597, 0
    %v669 = vsel %vm277, %v598, 0
    %671 = vmatprep.subr.mxu0 0.0
    %672 = vmatpush1.msra.mxu0 %v583
    %673 = vmatprep.subr.mxu0 0.0
    %674 = vmatpush1.msra.mxu0 %v584
    %675 = vmatprep.subr.mxu0 0.0
    %676 = vmatpush1.msra.mxu0 %v585
    %677 = vmatprep.subr.mxu0 0.0
    %678 = vmatpush1.msra.mxu0 %v586
    %679 = vmatprep.subr.mxu0 0.0
    %680 = vmatpush1.msra.mxu0 %v587
    %681 = vmatprep.subr.mxu0 0.0
    %682 = vmatpush1.msra.mxu0 %v588
    %683 = vmatprep.subr.mxu0 0.0
    %684 = vmatpush1.msra.mxu0 %v589
    %685 = vmatprep.subr.mxu0 0.0
    %686 = vmatpush1.msra.mxu0 %v590
    %687 = vmatprep.subr.mxu0 0.0
    %688 = vmatpush1.msra.mxu0 0.0
    %689 = vmatprep.subr.mxu0 0.0
    %690 = vmatpush1.msra.mxu0 0.0
    %691 = vmatprep.subr.mxu0 0.0
    %692 = vmatpush1.msra.mxu0 0.0
    %693 = vmatprep.subr.mxu0 0.0
    %694 = vmatpush1.msra.mxu0 0.0
    %695 = vmatprep.subr.mxu0 0.0
    %696 = vmatpush1.msra.mxu0 0.0
    %697 = vmatprep.subr.mxu0 0.0
    %698 = vmatpush1.msra.mxu0 0.0
    %699 = vmatprep.subr.mxu0 0.0
    %700 = vmatpush1.msra.mxu0 0.0
    %701 = vmatprep.subr.mxu0 0.0
    %702 = vmatpush1.msra.mxu0 0.0
    %703 = vmatprep.subr.mxu0 0.0
    %704 = vmatpush1.msra.mxu0 0.0
    %705 = vmatprep.subr.mxu0 0.0
    %706 = vmatpush1.msra.mxu0 0.0
    %707 = vmatprep.subr.mxu0 0.0
    %708 = vmatpush1.msra.mxu0 0.0
    %709 = vmatprep.subr.mxu0 0.0
    %710 = vmatpush1.msra.mxu0 0.0
    %711 = vmatprep.subr.mxu0 0.0
    %712 = vmatpush1.msra.mxu0 0.0
    %713 = vmatprep.subr.mxu0 0.0
    %714 = vmatpush1.msra.mxu0 0.0
    %715 = vmatprep.subr.mxu0 0.0
    %716 = vmatpush1.msra.mxu0 0.0
    %717 = vmatprep.subr.mxu0 0.0
    %718 = vmatpush1.msra.mxu0 0.0
    %719 = vmatprep.subr.mxu0 0.0
    %720 = vmatpush1.msra.mxu0 0.0
    %721 = vmatprep.subr.mxu0 0.0
    %722 = vmatpush1.msra.mxu0 0.0
    %723 = vmatprep.subr.mxu0 0.0
    %724 = vmatpush1.msra.mxu0 0.0
    %725 = vmatprep.subr.mxu0 0.0
    %726 = vmatpush1.msra.mxu0 0.0
    %727 = vmatprep.subr.mxu0 0.0
    %728 = vmatpush1.msra.mxu0 0.0
    %729 = vmatprep.subr.mxu0 0.0
    %730 = vmatpush1.msra.mxu0 0.0
    %731 = vmatprep.subr.mxu0 0.0
    %732 = vmatpush1.msra.mxu0 0.0
    %733 = vmatprep.subr.mxu0 0.0
    %734 = vmatpush1.msra.mxu0 0.0
    %735 = vmatprep.mubr.f32.mxu0 0.0
    %736 = vmatmul.mubr.f32.gmra.mrb[0].mxu0 %v648
    %v737 = vpop.f32.mrb[0].mxu0
    %v738 = vadd.f32 %v610, %v737
    %v739 = vpop.f32.mrb[0].mxu0
    %740 = vmatprep.mubr.f32.mxu0 0.0
    %741 = vmatmul.mubr.f32.gmra.mrb[0].mxu0 %v651
    %v742 = vpop.f32.mrb[0].mxu0
    %v743 = vadd.f32 %v615, %v742
    %v744 = vpop.f32.mrb[0].mxu0
    %745 = vmatprep.mubr.f32.mxu0 0.0
    %746 = vmatmul.mubr.f32.gmra.mrb[0].mxu0 %v654
    %v747 = vpop.f32.mrb[0].mxu0
    %v748 = vadd.f32 %v620, %v747
    %v749 = vpop.f32.mrb[0].mxu0
    %750 = vmatprep.mubr.f32.mxu0 0.0
    %751 = vmatmul.mubr.f32.gmra.mrb[0].mxu0 %v657
    %v752 = vpop.f32.mrb[0].mxu0
    %v753 = vadd.f32 %v625, %v752
    %v754 = vpop.f32.mrb[0].mxu0
    %755 = vmatprep.mubr.f32.mxu0 0.0
    %756 = vmatmul.mubr.f32.gmra.mrb[0].mxu0 %v660
    %v757 = vpop.f32.mrb[0].mxu0
    %v758 = vadd.f32 %v630, %v757
    %v759 = vpop.f32.mrb[0].mxu0
    %760 = vmatprep.mubr.f32.mxu0 0.0
    %761 = vmatmul.mubr.f32.gmra.mrb[0].mxu0 %v663
    %v762 = vpop.f32.mrb[0].mxu0
    %v763 = vadd.f32 %v635, %v762
    %v764 = vpop.f32.mrb[0].mxu0
    %765 = vmatprep.mubr.f32.mxu0 0.0
    %766 = vmatmul.mubr.f32.gmra.mrb[0].mxu0 %v666
    %v767 = vpop.f32.mrb[0].mxu0
    %v768 = vadd.f32 %v640, %v767
    %v769 = vpop.f32.mrb[0].mxu0
    %770 = vmatprep.mubr.f32.mxu0 0.0
    %771 = vmatmul.mubr.f32.gmra.mrb[0].mxu0 %v669
    %v772 = vpop.f32.mrb[0].mxu0
    %v773 = vadd.f32 %v645, %v772
    %v774 = vpop.f32.mrb[0].mxu0
    %775 = vdwg.mxu0
    %v776 = vmax.f32 %v738, 0.0
    %v777 = vmax.f32 %v743, 0.0
    %v778 = vmax.f32 %v748, 0.0
    %v779 = vmax.f32 %v753, 0.0
    %v780 = vmax.f32 %v758, 0.0
    %v781 = vmax.f32 %v763, 0.0
    %v782 = vmax.f32 %v768, 0.0
    %v783 = vmax.f32 %v773, 0.0
    %v784 = vmin.f32 %v776, 1.0
    %v785 = vmin.f32 %v777, 1.0
    %v786 = vmin.f32 %v778, 1.0
    %v787 = vmin.f32 %v779, 1.0
    %v788 = vmin.f32 %v780, 1.0
    %v789 = vmin.f32 %v781, 1.0
    %v790 = vmin.f32 %v782, 1.0
    %v791 = vmin.f32 %v783, 1.0
    %v792 = vld [vmem:[%s9] sm:$0xff]
    %v793 = vld [vmem:[%s9 + $0x8] sm:$0xff]
    %v794 = vld [vmem:[%s9 + $0x10] sm:$0xff]
    %v795 = vld [vmem:[%s9 + $0x18] sm:$0x3]
    %v796 = vld [vmem:[%s10] sm:$0xff]
    %v797 = vld [vmem:[%s10 + $0x8] sm:$0xff]
    %v798 = vld [vmem:[%s10 + $0x10] sm:$0xff]
    %v799 = vld [vmem:[%s10 + $0x18] sm:$0x3]
    %801 = vset.pattern.permute.xlu0 0
    %802 = vperm.xlu0 %801, %v796
    %v803 = vpop.permute.xlu0 %802
    %806 = vset.pattern.permute.xlu0 0
    %807 = vperm.xlu0 %806, %v797
    %v808 = vpop.permute.xlu0 %807
    %811 = vset.pattern.permute.xlu0 0
    %812 = vperm.xlu0 %811, %v798
    %v813 = vpop.permute.xlu0 %812
    %816 = vset.pattern.permute.xlu0 0
    %817 = vperm.xlu0 %816, %v799
    %v818 = vpop.permute.xlu0 %817
    %v821 = vsel %vm277, %v792, 0
    %v824 = vsel %vm277, %v793, 0
    %v827 = vsel %vm277, %v794, 0
    %v830 = vsel %vm277, %v795, 0
    %832 = vmatprep.subr.mxu0 0.0
    %833 = vmatpush1.msra.mxu0 %v784
    %834 = vmatprep.subr.mxu0 0.0
    %835 = vmatpush1.msra.mxu0 %v785
    %836 = vmatprep.subr.mxu0 0.0
    %837 = vmatpush1.msra.mxu0 %v786
    %838 = vmatprep.subr.mxu0 0.0
    %839 = vmatpush1.msra.mxu0 %v787
    %840 = vmatprep.subr.mxu0 0.0
    %841 = vmatpush1.msra.mxu0 %v788
    %842 = vmatprep.subr.mxu0 0.0
    %843 = vmatpush1.msra.mxu0 %v789
    %844 = vmatprep.subr.mxu0 0.0
    %845 = vmatpush1.msra.mxu0 %v790
    %846 = vmatprep.subr.mxu0 0.0
    %847 = vmatpush1.msra.mxu0 %v791
    %848 = vmatprep.subr.mxu0 0.0
    %849 = vmatpush1.msra.mxu0 0.0
    %850 = vmatprep.subr.mxu0 0.0
    %851 = vmatpush1.msra.mxu0 0.0
    %852 = vmatprep.subr.mxu0 0.0
    %853 = vmatpush1.msra.mxu0 0.0
    %854 = vmatprep.subr.mxu0 0.0
    %855 = vmatpush1.msra.mxu0 0.0
    %856 = vmatprep.subr.mxu0 0.0
    %857 = vmatpush1.msra.mxu0 0.0
    %858 = vmatprep.subr.mxu0 0.0
    %859 = vmatpush1.msra.mxu0 0.0
    %860 = vmatprep.subr.mxu0 0.0
    %861 = vmatpush1.msra.mxu0 0.0
    %862 = vmatprep.subr.mxu0 0.0
    %863 = vmatpush1.msra.mxu0 0.0
    %864 = vmatprep.subr.mxu0 0.0
    %865 = vmatpush1.msra.mxu0 0.0
    %866 = vmatprep.subr.mxu0 0.0
    %867 = vmatpush1.msra.mxu0 0.0
    %868 = vmatprep.subr.mxu0 0.0
    %869 = vmatpush1.msra.mxu0 0.0
    %870 = vmatprep.subr.mxu0 0.0
    %871 = vmatpush1.msra.mxu0 0.0
    %872 = vmatprep.subr.mxu0 0.0
    %873 = vmatpush1.msra.mxu0 0.0
    %874 = vmatprep.subr.mxu0 0.0
    %875 = vmatpush1.msra.mxu0 0.0
    %876 = vmatprep.subr.mxu0 0.0
    %877 = vmatpush1.msra.mxu0 0.0
    %878 = vmatprep.subr.mxu0 0.0
    %879 = vmatpush1.msra.mxu0 0.0
    %880 = vmatprep.subr.mxu0 0.0
    %881 = vmatpush1.msra.mxu0 0.0
    %882 = vmatprep.subr.mxu0 0.0
    %883 = vmatpush1.msra.mxu0 0.0
    %884 = vmatprep.subr.mxu0 0.0
    %885 = vmatpush1.msra.mxu0 0.0
    %886 = vmatprep.subr.mxu0 0.0
    %887 = vmatpush1.msra.mxu0 0.0
    %888 = vmatprep.subr.mxu0 0.0
    %889 = vmatpush1.msra.mxu0 0.0
    %890 = vmatprep.subr.mxu0 0.0
    %891 = vmatpush1.msra.mxu0 0.0
    %892 = vmatprep.subr.mxu0 0.0
    %893 = vmatpush1.msra.mxu0 0.0
    %894 = vmatprep.subr.mxu0 0.0
    %895 = vmatpush1.msra.mxu0 0.0
    %896 = vmatprep.mubr.f32.mxu0 0.0
    %897 = vmatmul.mubr.f32.gmra.mrb[0].mxu0 %v821
    %v898 = vpop.f32.mrb[0].mxu0
    %v899 = vadd.f32 %v803, %v898
    %v900 = vpop.f32.mrb[0].mxu0
    %901 = vmatprep.mubr.f32.mxu0 0.0
    %902 = vmatmul.mubr.f32.gmra.mrb[0].mxu0 %v824
    %v903 = vpop.f32.mrb[0].mxu0
    %v904 = vadd.f32 %v808, %v903
    %v905 = vpop.f32.mrb[0].mxu0
    %906 = vmatprep.mubr.f32.mxu0 0.0
    %907 = vmatmul.mubr.f32.gmra.mrb[0].mxu0 %v827
    %v908 = vpop.f32.mrb[0].mxu0
    %v909 = vadd.f32 %v813, %v908
    %v910 = vpop.f32.mrb[0].mxu0
    %911 = vmatprep.mubr.f32.mxu0 0.0
    %912 = vmatmul.mubr.f32.gmra.mrb[0].mxu0 %v830
    %v913 = vpop.f32.mrb[0].mxu0
    %v914 = vadd.f32 %v818, %v913
    %v915 = vpop.f32.mrb[0].mxu0
    %916 = vdwg.mxu0
    %917 = vst.msk [vmem:[#allocation2] sm:$0xff] %vm99, %v899
    %918 = vst.msk [vmem:[#allocation2 + $0x8] sm:$0xff] %vm99, %v904
    %919 = vst.msk [vmem:[#allocation2 + $0x10] sm:$0xff] %vm99, %v909
    %vm920 = vcmask 205824
    %921 = vst.msk [vmem:[#allocation2 + $0x18] sm:$0x3] %vm920, %v914
    // Predicated region
    $region46: #{_forward_fm.1} parent=1 // pred_check
      _
    $region47: #{_forward_fm.1} parent=1 // pred_check_branch
      %923 = sbr.rel (0) target = $region49
    $region48: #{_forward_fm.1} parent=1 // pred_region
      %s925 = ssub.s32 512, 512
      %926 = vsyncadd [#allocation3], %s925
      %s927 = sshll.u32 [#allocation2], 4
      %s928 = int_to_ptr.vmem [resolvable:$true] %s927
      %933 = dma.vmem_to_hbm [thread:$0]  %s928, 512, %s11, [#allocation3], 128, 128, 8
    $region49: #{_forward_fm.1} parent=1 // pred_fallthru
      _
    // Predicated region
    $region50: #{_forward_fm.1} parent=1 // pred_check
      _
    $region51: #{_forward_fm.1} parent=1 // pred_check_branch
      %935 = sbr.rel (0) target = $region53
    $region52: #{_forward_fm.1} parent=1 // pred_region
      %936 = dma.done [#allocation3], 512
    $region53: #{_forward_fm.1} parent=1 // pred_fallthru
      _
    %937 = vsyncpa [#allocation3], 1

</llo_original>
